<compile_context>
chip_gen: v5e
topology: v5e:2x2
jax: 0.10.0
libtpu: 0.0.40
codegen_flags: <defaults>
</compile_context>

<pallas_src>
import jax
import jax.numpy as jnp
from jax.experimental import pallas as pl
from jax.experimental.pallas import tpu as pltpu

EF_DIM = 128


def _round_up(x, m):
    return ((x + m - 1) // m) * m


# ----------------------------------------------------------------------------
# Encoder kernel: per-point MLP + max-pool (one grid step per batch element).
# The decoder's point-bias bp is folded into the pooled feature here so the
# decoder does a single broadcast-add per tile.
# ----------------------------------------------------------------------------
def encoder_kernel(inp_ref, w1_ref, b1_ref, bp_ref, feat_ref):
    # inp_ref : (1, N, 3)   w1: (3, E)  b1: (1, E)  bp: (1, E)
    # feat_ref: (1, 1, E)
    x = inp_ref[0]                                            # (N, 3)
    # K=3 contraction as three VPU broadcast-FMAs (no degenerate MXU matmul).
    h = (x[:, 0:1] * w1_ref[0:1, :]
         + x[:, 1:2] * w1_ref[1:2, :]
         + x[:, 2:3] * w1_ref[2:3, :])                        # (N, E)
    h = jnp.maximum(h + b1_ref[...], 0.0)                     # ReLU
    # Max-pool over the point axis (XLU) + fold in bp.
    feat_ref[0] = jnp.max(h, axis=0, keepdims=True) + bp_ref[...]   # (1, E)


# ----------------------------------------------------------------------------
# Decoder + linear_bool head kernel (both grid axes fully parallel).
# ----------------------------------------------------------------------------
def decoder_kernel(p_ref, feat_ref, wp_ref, w2_ref, b2_ref, wb_ref, bb_ref,
                   out_ref):
    # p_ref  : (1, TM, 3)   feat: (1, 1, E)  (already includes bp)
    # wp     : (3, E)       w2 : (E, E) bf16   b2: (1, E)
    # wb     : (E, 3) bf16  bb : (1, 3)
    # out_ref: (1, TM, 3)
    pt = p_ref[0]                                             # (TM, 3)

    # K=3 contraction p @ Wp as three VPU broadcast-FMAs (keeps the MXU free).
    h = (pt[:, 0:1] * wp_ref[0:1, :]
         + pt[:, 1:2] * wp_ref[1:2, :]
         + pt[:, 2:3] * wp_ref[2:3, :])                       # (TM, E)
    h = jnp.maximum(h + feat_ref[0], 0.0)                     # feat incl. bp

    # Main (TM,E)@(E,E) contraction on the MXU: bf16 operands, f32 accumulate.
    h = jnp.dot(h.astype(w2_ref.dtype), w2_ref[...],
                preferred_element_type=jnp.float32)           # (TM, E)
    h = jnp.maximum(h + b2_ref[...], 0.0)

    # linear_bool head + sigmoid -> Bernoulli probabilities.
    logits = jnp.dot(h.astype(wb_ref.dtype), wb_ref[...],
                     preferred_element_type=jnp.float32)      # (TM, 3)
    out_ref[0] = jax.nn.sigmoid(logits + bb_ref[...])


# ----------------------------------------------------------------------------
# Params / wrapper
# ----------------------------------------------------------------------------
def make_params(key, ef_dim=EF_DIM):
    ks = jax.random.split(key, 8)
    scale = 0.1
    return dict(
        w1=scale * jax.random.normal(ks[0], (3, ef_dim), jnp.float32),
        b1=scale * jax.random.normal(ks[1], (1, ef_dim), jnp.float32),
        wp=scale * jax.random.normal(ks[2], (3, ef_dim), jnp.float32),
        bp=scale * jax.random.normal(ks[3], (1, ef_dim), jnp.float32),
        w2=scale * jax.random.normal(ks[4], (ef_dim, ef_dim), jnp.float32),
        b2=scale * jax.random.normal(ks[5], (1, ef_dim), jnp.float32),
        wb=scale * jax.random.normal(ks[6], (ef_dim, 3), jnp.float32),
        bb=scale * jax.random.normal(ks[7], (1, 3), jnp.float32),
    )


def convonet_forward(p, inputs, params, *, tm=2048, use_bf16=True):
    """p: (B, M, 3) query points; inputs: (B, N, 3) conditioning point cloud."""
    B, M, _ = p.shape
    _, N, _ = inputs.shape
    E = EF_DIM
    vmem_limit = 48 * 1024 * 1024

    # ---- encoder: pooled feature per batch element (bp folded in) ----------
    feat = pl.pallas_call(
        encoder_kernel,
        out_shape=jax.ShapeDtypeStruct((B, 1, E), jnp.float32),
        grid=(B,),
        in_specs=[
            pl.BlockSpec((1, N, 3), lambda b: (b, 0, 0)),     # point cloud
            pl.BlockSpec((3, E), lambda b: (0, 0)),           # W1
            pl.BlockSpec((1, E), lambda b: (0, 0)),           # b1
            pl.BlockSpec((1, E), lambda b: (0, 0)),           # bp (folded)
        ],
        out_specs=pl.BlockSpec((1, 1, E), lambda b: (b, 0, 0)),
        compiler_params=pltpu.CompilerParams(
            dimension_semantics=("parallel",),
            vmem_limit_bytes=vmem_limit),
    )(inputs, params["w1"], params["b1"], params["bp"])

    # ---- decoder + head -----------------------------------------------------
    mxu_dtype = jnp.bfloat16 if use_bf16 else jnp.float32
    w2 = params["w2"].astype(mxu_dtype)                       # bf16 MXU operands,
    wb = params["wb"].astype(mxu_dtype)                       # halves W2 DMA too

    # Query tile: big lane/sublane tile, multiple of 8, capped at padded M.
    tm_eff = _round_up(min(tm, M), 8)
    m_pad = -M % tm_eff
    if m_pad:  # padded query rows produce garbage probs that are sliced off
        p = jnp.pad(p, ((0, 0), (0, m_pad), (0, 0)))
    mp = M + m_pad

    out = pl.pallas_call(
        decoder_kernel,
        out_shape=jax.ShapeDtypeStruct((B, mp, 3), jnp.float32),
        grid=(B, mp // tm_eff),
        in_specs=[
            pl.BlockSpec((1, tm_eff, 3), lambda b, m: (b, m, 0)),  # query tile
            pl.BlockSpec((1, 1, E), lambda b, m: (b, 0, 0)),       # feat(+bp)
            pl.BlockSpec((3, E), lambda b, m: (0, 0)),             # Wp
            pl.BlockSpec((E, E), lambda b, m: (0, 0)),             # W2 (bf16)
            pl.BlockSpec((1, E), lambda b, m: (0, 0)),             # b2
            pl.BlockSpec((E, 3), lambda b, m: (0, 0)),             # Wb (bf16)
            pl.BlockSpec((1, 3), lambda b, m: (0, 0)),             # bb
        ],
        out_specs=pl.BlockSpec((1, tm_eff, 3), lambda b, m: (b, m, 0)),
        compiler_params=pltpu.CompilerParams(
            dimension_semantics=("parallel", "parallel"),      # both axes megacore-splittable
            vmem_limit_bytes=vmem_limit),
    )(p, feat, params["wp"], w2, params["b2"], wb, params["bb"])

    return out[:, :M, :]


# Pure-JAX reference (f32 throughout) for a sanity check of kernel semantics.
def convonet_ref(p, inputs, params):
    h = jnp.maximum(inputs @ params["w1"] + params["b1"][None], 0.0)
    feat = jnp.max(h, axis=1)                                  # (B, E)
    h = jnp.maximum(p @ params["wp"] + params["bp"][None] + feat[:, None, :], 0.0)
    h = jnp.maximum(h @ params["w2"] + params["b2"][None], 0.0)
    logits = h @ params["wb"] + params["bb"][None]
    return jax.nn.sigmoid(logits)


if __name__ == "__main__":
    key = jax.random.PRNGKey(0)
    kp, ki, kw = jax.random.split(key, 3)

    B, N, M = 2, 64, 512
    inputs = jax.random.normal(ki, (B, N, 3), jnp.float32)         # conditioning points
    p = jax.random.uniform(kp, (B, M, 3), jnp.float32, -0.5, 0.5)  # query points
    params = make_params(kw)

    out = convonet_forward(p, inputs, params, tm=2048, use_bf16=True)
    out = jax.block_until_ready(out)

    ref = convonet_ref(p, inputs, params)
    assert out.shape == (B, M, 3)
    err = float(jnp.max(jnp.abs(out - ref)))
    # bf16 MXU operands with f32 accumulate -> relaxed tolerance on probs.
    assert err < 2e-2, f"mismatch vs reference: max abs err = {err}"

    # TODO(synk): torch.distributions.Bernoulli object itself has no Pallas
    # equivalent; the forward-pass tensor output (sigmoid probabilities) is
    # reproduced.
    print("KERNEL_OK")
</pallas_src>

<mosaic_0001>
module attributes {stable_mosaic.version = 11 : i64} {
  func.func @encoder_kernel(%arg0: i32, %arg1: memref<1x64x3xf32, #tpu.memory_space<vmem>>, %arg2: memref<3x128xf32, #tpu.memory_space<vmem>>, %arg3: memref<1x128xf32, #tpu.memory_space<vmem>>, %arg4: memref<1x128xf32, #tpu.memory_space<vmem>>, %arg5: memref<1x1x128xf32, #tpu.memory_space<vmem>>) attributes {dimension_semantics = [#tpu.dimension_semantics<parallel>], iteration_bounds = array<i64: 2>, scalar_prefetch = 0 : i64, scratch_operands = 0 : i64, tpu.core_type = #tpu.core_type<tc>, window_params = [{transform_indices = @transform_0, window_bounds = array<i64: 1, 64, 3>}, {pipeline_mode = #tpu.pipeline_mode<synchronous>, transform_indices = @transform_1, window_bounds = array<i64: 3, 128>}, {pipeline_mode = #tpu.pipeline_mode<synchronous>, transform_indices = @transform_2, window_bounds = array<i64: 1, 128>}, {pipeline_mode = #tpu.pipeline_mode<synchronous>, transform_indices = @transform_3, window_bounds = array<i64: 1, 128>}, {transform_indices = @transform_4, window_bounds = array<i64: 1, 1, 128>}]} {
    %c0 = arith.constant 0 : index
    %c0_0 = arith.constant 0 : index
    %c0_1 = arith.constant 0 : index
    %0 = vector.load %arg1[%c0, %c0_0, %c0_1] : memref<1x64x3xf32, #tpu.memory_space<vmem>>, vector<1x64x3xf32>
    %1 = vector.shape_cast %0 : vector<1x64x3xf32> to vector<64x3xf32>
    %2 = vector.extract_strided_slice %1 {offsets = [0, 0], sizes = [64, 1], strides = [1, 1]} : vector<64x3xf32> to vector<64x1xf32>
    %c0_2 = arith.constant 0 : index
    %c0_3 = arith.constant 0 : index
    %3 = vector.load %arg2[%c0_2, %c0_3] : memref<3x128xf32, #tpu.memory_space<vmem>>, vector<1x128xf32>
    %4 = vector.broadcast %2 : vector<64x1xf32> to vector<64x128xf32>
    %5 = vector.broadcast %3 : vector<1x128xf32> to vector<64x128xf32>
    %6 = arith.mulf %4, %5 : vector<64x128xf32>
    %7 = vector.extract_strided_slice %1 {offsets = [0, 1], sizes = [64, 1], strides = [1, 1]} : vector<64x3xf32> to vector<64x1xf32>
    %c1 = arith.constant 1 : index
    %c0_4 = arith.constant 0 : index
    %8 = vector.load %arg2[%c1, %c0_4] : memref<3x128xf32, #tpu.memory_space<vmem>>, vector<1x128xf32>
    %9 = vector.broadcast %7 : vector<64x1xf32> to vector<64x128xf32>
    %10 = vector.broadcast %8 : vector<1x128xf32> to vector<64x128xf32>
    %11 = arith.mulf %9, %10 : vector<64x128xf32>
    %12 = arith.addf %6, %11 : vector<64x128xf32>
    %13 = vector.extract_strided_slice %1 {offsets = [0, 2], sizes = [64, 1], strides = [1, 1]} : vector<64x3xf32> to vector<64x1xf32>
    %c2 = arith.constant 2 : index
    %c0_5 = arith.constant 0 : index
    %14 = vector.load %arg2[%c2, %c0_5] : memref<3x128xf32, #tpu.memory_space<vmem>>, vector<1x128xf32>
    %15 = vector.broadcast %13 : vector<64x1xf32> to vector<64x128xf32>
    %16 = vector.broadcast %14 : vector<1x128xf32> to vector<64x128xf32>
    %17 = arith.mulf %15, %16 : vector<64x128xf32>
    %18 = arith.addf %12, %17 : vector<64x128xf32>
    %c0_6 = arith.constant 0 : index
    %c0_7 = arith.constant 0 : index
    %19 = vector.load %arg3[%c0_6, %c0_7] : memref<1x128xf32, #tpu.memory_space<vmem>>, vector<1x128xf32>
    %20 = vector.broadcast %19 : vector<1x128xf32> to vector<64x128xf32>
    %21 = arith.addf %18, %20 : vector<64x128xf32>
    %cst = arith.constant 0.000000e+00 : f32
    %22 = vector.broadcast %cst : f32 to vector<64x128xf32>
    %23 = arith.maximumf %21, %22 : vector<64x128xf32>
    %cst_8 = arith.constant dense<0xFF800000> : vector<128xf32>
    %24 = vector.multi_reduction <maximumf>, %23, %cst_8 [0] : vector<64x128xf32> to vector<128xf32>
    %25 = vector.shape_cast %24 : vector<128xf32> to vector<1x128xf32>
    %c0_9 = arith.constant 0 : index
    %c0_10 = arith.constant 0 : index
    %26 = vector.load %arg4[%c0_9, %c0_10] : memref<1x128xf32, #tpu.memory_space<vmem>>, vector<1x128xf32>
    %27 = arith.addf %25, %26 : vector<1x128xf32>
    %c0_11 = arith.constant 0 : index
    %c0_12 = arith.constant 0 : index
    %c0_13 = arith.constant 0 : index
    %28 = vector.load %arg5[%c0_11, %c0_12, %c0_13] : memref<1x1x128xf32, #tpu.memory_space<vmem>>, vector<1x1x128xf32>
    %29 = vector.shape_cast %28 : vector<1x1x128xf32> to vector<1x128xf32>
    %30 = vector.shape_cast %27 : vector<1x128xf32> to vector<1x1x128xf32>
    tpu.vector_store %arg5[%c0_11, %c0_12, %c0_13], %30 {strides = array<i32>} : memref<1x1x128xf32, #tpu.memory_space<vmem>>, vector<1x1x128xf32>,
    return
  }
  func.func @transform_0(%arg0: i32) -> (i32, i32, i32) {
    %c0_i32 = arith.constant 0 : i32
    %c0_i32_0 = arith.constant 0 : i32
    %c0_i32_1 = arith.constant 0 : i32
    return %arg0, %c0_i32, %c0_i32_0 : i32, i32, i32
  }
  func.func @transform_1(%arg0: i32) -> (i32, i32) {
    %c0_i32 = arith.constant 0 : i32
    %c0_i32_0 = arith.constant 0 : i32
    %c0_i32_1 = arith.constant 0 : i32
    return %c0_i32, %c0_i32_0 : i32, i32
  }
  func.func @transform_2(%arg0: i32) -> (i32, i32) {
    %c0_i32 = arith.constant 0 : i32
    %c0_i32_0 = arith.constant 0 : i32
    %c0_i32_1 = arith.constant 0 : i32
    return %c0_i32, %c0_i32_0 : i32, i32
  }
  func.func @transform_3(%arg0: i32) -> (i32, i32) {
    %c0_i32 = arith.constant 0 : i32
    %c0_i32_0 = arith.constant 0 : i32
    %c0_i32_1 = arith.constant 0 : i32
    return %c0_i32, %c0_i32_0 : i32, i32
  }
  func.func @transform_4(%arg0: i32) -> (i32, i32, i32) {
    %c0_i32 = arith.constant 0 : i32
    %c0_i32_0 = arith.constant 0 : i32
    %c0_i32_1 = arith.constant 0 : i32
    return %arg0, %c0_i32, %c0_i32_0 : i32, i32, i32
  }
}

</mosaic_0001>

<llo_original>
// kernel: tpu_custom_call.1
$region0: #{tpu_custom_call.1}
  #allocation0 [shape = 'u32[]', space=smem, size = 0x4, offset = 0x4, fixed_abs, tag = 'smem constant byte address 0x4 - core index']
  #allocation1 [shape = 'u32[72,128]{1,0:T(1,128)}', space=vmem, size = 0x9000, scoped, tag = 'internal scratch']
  %s0 = inlined_call_operand.vmem [shape: f32[2,64,3], index: 0, kind: input, shape index: {}]
  %s1 = inlined_call_operand.vmem [shape: f32[3,128], index: 1, kind: input, shape index: {}]
  %s2 = inlined_call_operand.vmem [shape: f32[1,128], index: 2, kind: input, shape index: {}]
  %s3 = inlined_call_operand.vmem [shape: f32[1,128], index: 3, kind: input, shape index: {}]
  %s4 = inlined_call_operand.hbm [shape: f32[2,1,128], index: 4, kind: output, shape index: {}]
  %s5 = sld [smem:[#allocation0]]
  $region49: #{tpu_custom_call.1} parent=0
    _
  %s7 = ssub.s32 1, %s5
  %s8 = scalar_select 0, %s7, %s5
  $region1: #{tpu_custom_call.1} parent=0
    #allocation2 [shape = 'u8[1024]{0}', space=vmem, size = 0x400, scoped, tag = 'output window, operand 0']
    #allocation3 [shape = 's32[2]{0}', space=sflag, size = 0x8, scoped, tag = 'scoped memory for tpu_custom_call.1']
    %9 = vsyncpa [#allocation3], 0
    %s10 = scalar_lea.sflag [#allocation3], 1
    %11 = vsyncpa %s10, 0
    loop: start=0, step=1, limit=4
    $region2: #{tpu_custom_call.1} parent=1 // loop_pre_header
      _
    $region3: #{tpu_custom_call.1} parent=1 // loop_header
      %s13 = sphi 0, %s17
      %p14 = scmp.ge.s32.totalorder %s13, 4
      %s23 = sphi 0, %s25
      %s26 = sphi 0, %s23
      %s27 = sphi 0, %s26
      %s43 = sphi 0, %s27
      %s47 = sphi 0, %s47
      %s49 = sphi 0, %s47
      %s50 = sphi 0, %s49
      %s64 = sphi 0, %s50
      %s68 = sphi 0, %s68
      %s70 = sphi 0, %s68
      %s71 = sphi 0, %s70
      %s85 = sphi 0, %s71
      %s89 = sphi 0, %s89
      %s91 = sphi 0, %s89
      %s92 = sphi 0, %s91
      %s106 = sphi 0, %s92
      %s112 = sphi 0, %s114
      %s115 = sphi 0, %s112
      %s116 = sphi 0, %s115
      %s132 = sphi 0, %s116
    $region4: #{tpu_custom_call.1} parent=1 // loop_header_branch
      %16 = sbr.rel (%p14) target = $region8
    $region5: #{tpu_custom_call.1} parent=1 // loop_body
      %s18 = ssub.s32 %s13, 1
      %s19 = ssub.s32 %s13, 2
      %s20 = sadd.s32 %s13, 1
      %s21 = ssub.s32 %s13, %s20
      %p22 = scmp.eq.s32.totalorder %s21, 0
      %s24 = sadd.s32 %s23, 1
      %s25 = scalar_select %p22, %s23, %s24
      %p28 = pneg %p22
      %p29 = scmp.eq.s32.totalorder %s13, 1
      %p30 = por %p28, %p29
      %p31 = scmp.ne.s32.totalorder %s23, %s26
      %p32 = scmp.eq.s32.totalorder %s13, 0
      %p33 = por %p31, %p32
      %p34 = scmp.ne.s32.totalorder %s23, %s26
      %p35 = scmp.eq.s32.totalorder %s18, 1
      %p36 = por %p34, %p35
      %p37 = scmp.ne.s32.totalorder %s26, %s27
      %p38 = scmp.eq.s32.totalorder %s18, 0
      %p39 = por %p37, %p38
      %p40 = scmp.ne.s32.totalorder %s26, %s27
      %p41 = scmp.eq.s32.totalorder %s19, 1
      %p42 = por %p40, %p41
      %p44 = scmp.ne.s32.totalorder %s27, %s43
      %p45 = scmp.eq.s32.totalorder %s19, 0
      %p46 = por %p44, %p45
      %s48 = sadd.s32 %s47, 1
      %p51 = scmp.eq.s32.totalorder %s13, 1
      %p52 = scmp.ne.s32.totalorder %s47, %s49
      %p53 = scmp.eq.s32.totalorder %s13, 0
      %p54 = por %p52, %p53
      %p55 = scmp.ne.s32.totalorder %s47, %s49
      %p56 = scmp.eq.s32.totalorder %s18, 1
      %p57 = por %p55, %p56
      %p58 = scmp.ne.s32.totalorder %s49, %s50
      %p59 = scmp.eq.s32.totalorder %s18, 0
      %p60 = por %p58, %p59
      %p61 = scmp.ne.s32.totalorder %s49, %s50
      %p62 = scmp.eq.s32.totalorder %s19, 1
      %p63 = por %p61, %p62
      %p65 = scmp.ne.s32.totalorder %s50, %s64
      %p66 = scmp.eq.s32.totalorder %s19, 0
      %p67 = por %p65, %p66
      %s69 = sadd.s32 %s68, 1
      %p72 = scmp.eq.s32.totalorder %s13, 1
      %p73 = scmp.ne.s32.totalorder %s68, %s70
      %p74 = scmp.eq.s32.totalorder %s13, 0
      %p75 = por %p73, %p74
      %p76 = scmp.ne.s32.totalorder %s68, %s70
      %p77 = scmp.eq.s32.totalorder %s18, 1
      %p78 = por %p76, %p77
      %p79 = scmp.ne.s32.totalorder %s70, %s71
      %p80 = scmp.eq.s32.totalorder %s18, 0
      %p81 = por %p79, %p80
      %p82 = scmp.ne.s32.totalorder %s70, %s71
      %p83 = scmp.eq.s32.totalorder %s19, 1
      %p84 = por %p82, %p83
      %p86 = scmp.ne.s32.totalorder %s71, %s85
      %p87 = scmp.eq.s32.totalorder %s19, 0
      %p88 = por %p86, %p87
      %s90 = sadd.s32 %s89, 1
      %p93 = scmp.eq.s32.totalorder %s13, 1
      %p94 = scmp.ne.s32.totalorder %s89, %s91
      %p95 = scmp.eq.s32.totalorder %s13, 0
      %p96 = por %p94, %p95
      %p97 = scmp.ne.s32.totalorder %s89, %s91
      %p98 = scmp.eq.s32.totalorder %s18, 1
      %p99 = por %p97, %p98
      %p100 = scmp.ne.s32.totalorder %s91, %s92
      %p101 = scmp.eq.s32.totalorder %s18, 0
      %p102 = por %p100, %p101
      %p103 = scmp.ne.s32.totalorder %s91, %s92
      %p104 = scmp.eq.s32.totalorder %s19, 1
      %p105 = por %p103, %p104
      %p107 = scmp.ne.s32.totalorder %s92, %s106
      %p108 = scmp.eq.s32.totalorder %s19, 0
      %p109 = por %p107, %p108
      %s110 = ssub.s32 %s13, %s20
      %p111 = scmp.eq.s32.totalorder %s110, 0
      %s113 = sadd.s32 %s112, 1
      %s114 = scalar_select %p111, %s112, %s113
      %p117 = pneg %p111
      %p118 = scmp.eq.s32.totalorder %s13, 1
      %p119 = por %p117, %p118
      %p120 = scmp.ne.s32.totalorder %s112, %s115
      %p121 = scmp.eq.s32.totalorder %s13, 0
      %p122 = por %p120, %p121
      %p123 = scmp.ne.s32.totalorder %s112, %s115
      %p124 = scmp.eq.s32.totalorder %s18, 1
      %p125 = por %p123, %p124
      %p126 = scmp.ne.s32.totalorder %s115, %s116
      %p127 = scmp.eq.s32.totalorder %s18, 0
      %p128 = por %p126, %p127
      %p129 = scmp.ne.s32.totalorder %s115, %s116
      %p130 = scmp.eq.s32.totalorder %s19, 1
      %p131 = por %p129, %p130
      %p133 = scmp.ne.s32.totalorder %s116, %s132
      %p134 = scmp.eq.s32.totalorder %s19, 0
      %p135 = por %p133, %p134
      %p136 = scmp.le.s32.totalorder 1, %s13
      %p137 = scmp.lt.s32.totalorder %s13, 3
      %p138 = pnand %p136, %p137
      %p139 = pneg %p138
      // Predicated region
      $region9: #{tpu_custom_call.1} parent=5 // pred_check
        _
      $region10: #{tpu_custom_call.1} parent=5 // pred_check_branch
        %141 = sbr.rel (%p138) target = $region12
      $region11: #{tpu_custom_call.1} parent=5 // pred_region
        %s142 = ssub.s32 %s13, 1
        // Predicated region
        $region13: #{tpu_custom_call.1} parent=11 // pred_check
          %p143 = pneg %p60
        $region14: #{tpu_custom_call.1} parent=11 // pred_check_branch
          %145 = sbr.rel (%p143) target = $region16
        $region15: #{tpu_custom_call.1} parent=11 // pred_region
          _
        $region16: #{tpu_custom_call.1} parent=11 // pred_fallthru
          _
        // Predicated region
        $region17: #{tpu_custom_call.1} parent=11 // pred_check
          %p146 = pneg %p81
        $region18: #{tpu_custom_call.1} parent=11 // pred_check_branch
          %148 = sbr.rel (%p146) target = $region20
        $region19: #{tpu_custom_call.1} parent=11 // pred_region
          _
        $region20: #{tpu_custom_call.1} parent=11 // pred_fallthru
          _
        // Predicated region
        $region21: #{tpu_custom_call.1} parent=11 // pred_check
          %p149 = pneg %p102
        $region22: #{tpu_custom_call.1} parent=11 // pred_check_branch
          %151 = sbr.rel (%p149) target = $region24
        $region23: #{tpu_custom_call.1} parent=11 // pred_region
          _
        $region24: #{tpu_custom_call.1} parent=11 // pred_fallthru
          _
      $region12: #{tpu_custom_call.1} parent=5 // pred_fallthru
        _
      %p152 = scmp.lt.s32.totalorder %s13, 2
      // Predicated region
      $region25: #{tpu_custom_call.1} parent=5 // pred_check
        %p153 = pneg %p152
      $region26: #{tpu_custom_call.1} parent=5 // pred_check_branch
        %155 = sbr.rel (%p153) target = $region28
      $region27: #{tpu_custom_call.1} parent=5 // pred_region
        // Predicated region
        $region29: #{tpu_custom_call.1} parent=27 // pred_check
          %p156 = pneg %p33
        $region30: #{tpu_custom_call.1} parent=27 // pred_check_branch
          %158 = sbr.rel (%p156) target = $region32
        $region31: #{tpu_custom_call.1} parent=27 // pred_region
          %p159 = scmp.lt.s32.totalorder %s13, 1
          %s160 = scalar_select %p159, %s13, 1
          %s161 = smul.addr %s160, 8
          %s162 = smul.addr %s161, 8
          %s163 = scalar_lea.vmem %s0, %s162
        $region32: #{tpu_custom_call.1} parent=27 // pred_fallthru
          _
      $region28: #{tpu_custom_call.1} parent=5 // pred_fallthru
        _
      %p164 = scmp.le.s32.totalorder 1, %s13
      %p165 = scmp.lt.s32.totalorder %s13, 3
      %p166 = pnand %p164, %p165
      %p167 = pneg %p166
      // Predicated region
      $region33: #{tpu_custom_call.1} parent=5 // pred_check
        _
      $region34: #{tpu_custom_call.1} parent=5 // pred_check_branch
        %169 = sbr.rel (%p166) target = $region36
      $region35: #{tpu_custom_call.1} parent=5 // pred_region
        %s170 = ssub.s32 %s13, 1
        %p171 = scmp.lt.s32.totalorder %s18, 1
        %s172 = scalar_select %p171, %s18, 1
        %s173 = smul.addr %s172, 8
        %s174 = smul.addr %s173, 8
        %s175 = scalar_lea.vmem %s0, %s174
        %p176 = pneg %p39
        %p177 = pneg %p36
        %p178 = pneg %p60
        %p179 = pneg %p57
        %p180 = pneg %p81
        %p181 = pneg %p78
        %p182 = pneg %p102
        %p183 = pneg %p99
        %p184 = pneg %p128
        %p185 = pneg %p125
        %s186 = sand.u32 %s115, 1
        %s187 = scalar_lea.sflag [#allocation3], %s186
        %s188 = sand.u32 %s115, 1
        %s189 = scalar_lea.vmem [#allocation2], %s188
        %p190 = scmp.lt.s32.totalorder %s18, 1
        %s191 = scalar_select %p190, %s18, 1
        %s192 = smul.addr %s191, 8
        %s193 = smul.addr %s192, 8
        %s194 = scalar_lea.vmem %s0, %s193
        %v195 = vld [vmem:[%s194] sm:$0xff]
        %v196 = vld [vmem:[%s194 + $0x8] sm:$0xff]
        %v197 = vld [vmem:[%s194 + $0x10] sm:$0xff]
        %v198 = vld [vmem:[%s194 + $0x18] sm:$0xff]
        %v199 = vld [vmem:[%s194 + $0x20] sm:$0xff]
        %v200 = vld [vmem:[%s194 + $0x28] sm:$0xff]
        %v201 = vld [vmem:[%s194 + $0x30] sm:$0xff]
        %v202 = vld [vmem:[%s194 + $0x38] sm:$0xff]
        %v203 = vld [vmem:[%s1] sm:$0x1]
        %205 = vset.pattern.permute.xlu0 0
        %206 = vperm.xlu0 %205, %v195
        %v207 = vpop.permute.xlu0 %206
        %210 = vset.pattern.permute.xlu0 0
        %211 = vperm.xlu0 %210, %v196
        %v212 = vpop.permute.xlu0 %211
        %215 = vset.pattern.permute.xlu0 0
        %216 = vperm.xlu0 %215, %v197
        %v217 = vpop.permute.xlu0 %216
        %220 = vset.pattern.permute.xlu0 0
        %221 = vperm.xlu0 %220, %v198
        %v222 = vpop.permute.xlu0 %221
        %225 = vset.pattern.permute.xlu0 0
        %226 = vperm.xlu0 %225, %v199
        %v227 = vpop.permute.xlu0 %226
        %230 = vset.pattern.permute.xlu0 0
        %231 = vperm.xlu0 %230, %v200
        %v232 = vpop.permute.xlu0 %231
        %235 = vset.pattern.permute.xlu0 0
        %236 = vperm.xlu0 %235, %v201
        %v237 = vpop.permute.xlu0 %236
        %240 = vset.pattern.permute.xlu0 0
        %241 = vperm.xlu0 %240, %v202
        %v242 = vpop.permute.xlu0 %241
        %v244 = vperm.slane %v203, 0
        %v245 = vmul.f32 %v207, %v244
        %v246 = vmul.f32 %v212, %v244
        %v247 = vmul.f32 %v217, %v244
        %v248 = vmul.f32 %v222, %v244
        %v249 = vmul.f32 %v227, %v244
        %v250 = vmul.f32 %v232, %v244
        %v251 = vmul.f32 %v237, %v244
        %v252 = vmul.f32 %v242, %v244
        %v253 = vld [vmem:[%s1 + $0x1] sm:$0x1]
        %254 = vset.pattern.permute.xlu0 1
        %255 = vperm.xlu0 %254, %v195
        %v256 = vpop.permute.xlu0 %255
        %258 = vset.pattern.permute.xlu0 1
        %259 = vperm.xlu0 %258, %v196
        %v260 = vpop.permute.xlu0 %259
        %262 = vset.pattern.permute.xlu0 1
        %263 = vperm.xlu0 %262, %v197
        %v264 = vpop.permute.xlu0 %263
        %266 = vset.pattern.permute.xlu0 1
        %267 = vperm.xlu0 %266, %v198
        %v268 = vpop.permute.xlu0 %267
        %270 = vset.pattern.permute.xlu0 1
        %271 = vperm.xlu0 %270, %v199
        %v272 = vpop.permute.xlu0 %271
        %274 = vset.pattern.permute.xlu0 1
        %275 = vperm.xlu0 %274, %v200
        %v276 = vpop.permute.xlu0 %275
        %278 = vset.pattern.permute.xlu0 1
        %279 = vperm.xlu0 %278, %v201
        %v280 = vpop.permute.xlu0 %279
        %282 = vset.pattern.permute.xlu0 1
        %283 = vperm.xlu0 %282, %v202
        %v284 = vpop.permute.xlu0 %283
        %v286 = vperm.slane %v253, 0
        %v287 = vmul.f32 %v256, %v286
        %v288 = vmul.f32 %v260, %v286
        %v289 = vmul.f32 %v264, %v286
        %v290 = vmul.f32 %v268, %v286
        %v291 = vmul.f32 %v272, %v286
        %v292 = vmul.f32 %v276, %v286
        %v293 = vmul.f32 %v280, %v286
        %v294 = vmul.f32 %v284, %v286
        %v295 = vadd.f32 %v245, %v287
        %v296 = vadd.f32 %v246, %v288
        %v297 = vadd.f32 %v247, %v289
        %v298 = vadd.f32 %v248, %v290
        %v299 = vadd.f32 %v249, %v291
        %v300 = vadd.f32 %v250, %v292
        %v301 = vadd.f32 %v251, %v293
        %v302 = vadd.f32 %v252, %v294
        %v303 = vld [vmem:[%s1 + $0x2] sm:$0x1]
        %304 = vset.pattern.permute.xlu0 2
        %305 = vperm.xlu0 %304, %v195
        %v306 = vpop.permute.xlu0 %305
        %308 = vset.pattern.permute.xlu0 2
        %309 = vperm.xlu0 %308, %v196
        %v310 = vpop.permute.xlu0 %309
        %312 = vset.pattern.permute.xlu0 2
        %313 = vperm.xlu0 %312, %v197
        %v314 = vpop.permute.xlu0 %313
        %316 = vset.pattern.permute.xlu0 2
        %317 = vperm.xlu0 %316, %v198
        %v318 = vpop.permute.xlu0 %317
        %320 = vset.pattern.permute.xlu0 2
        %321 = vperm.xlu0 %320, %v199
        %v322 = vpop.permute.xlu0 %321
        %324 = vset.pattern.permute.xlu0 2
        %325 = vperm.xlu0 %324, %v200
        %v326 = vpop.permute.xlu0 %325
        %328 = vset.pattern.permute.xlu0 2
        %329 = vperm.xlu0 %328, %v201
        %v330 = vpop.permute.xlu0 %329
        %332 = vset.pattern.permute.xlu0 2
        %333 = vperm.xlu0 %332, %v202
        %v334 = vpop.permute.xlu0 %333
        %v336 = vperm.slane %v303, 0
        %v337 = vmul.f32 %v306, %v336
        %v338 = vmul.f32 %v310, %v336
        %v339 = vmul.f32 %v314, %v336
        %v340 = vmul.f32 %v318, %v336
        %v341 = vmul.f32 %v322, %v336
        %v342 = vmul.f32 %v326, %v336
        %v343 = vmul.f32 %v330, %v336
        %v344 = vmul.f32 %v334, %v336
        %v345 = vadd.f32 %v295, %v337
        %v346 = vadd.f32 %v296, %v338
        %v347 = vadd.f32 %v297, %v339
        %v348 = vadd.f32 %v298, %v340
        %v349 = vadd.f32 %v299, %v341
        %v350 = vadd.f32 %v300, %v342
        %v351 = vadd.f32 %v301, %v343
        %v352 = vadd.f32 %v302, %v344
        %v353 = vld [vmem:[%s2] sm:$0x1]
        %v355 = vperm.slane %v353, 0
        %v357 = vadd.f32 %v345, %v355
        %v358 = vadd.f32 %v346, %v355
        %v359 = vadd.f32 %v347, %v355
        %v360 = vadd.f32 %v348, %v355
        %v361 = vadd.f32 %v349, %v355
        %v362 = vadd.f32 %v350, %v355
        %v363 = vadd.f32 %v351, %v355
        %v364 = vadd.f32 %v352, %v355
        %v365 = vmax.f32 %v357, 0.0
        %v366 = vmax.f32 %v358, 0.0
        %v367 = vmax.f32 %v359, 0.0
        %v368 = vmax.f32 %v360, 0.0
        %v369 = vmax.f32 %v361, 0.0
        %v370 = vmax.f32 %v362, 0.0
        %v371 = vmax.f32 %v363, 0.0
        %v372 = vmax.f32 %v364, 0.0
        %v373 = vmax.f32 %v365, %v369
        %v374 = vmax.f32 %v366, %v370
        %v375 = vmax.f32 %v367, %v371
        %v376 = vmax.f32 %v368, %v372
        %v377 = vmax.f32 %v373, %v374
        %v378 = vmax.f32 %v375, %v376
        %v379 = vmax.f32 %v377, %v378
        %v380 = vrot.slane %v379, 4
        %v381 = vmax.f32 %v379, %v380
        %v382 = vrot.slane %v381, 2
        %v383 = vmax.f32 %v381, %v382
        %v384 = vrot.slane %v383, 1
        %v385 = vmax.f32 %v383, %v384
        %v386 = vld [vmem:[%s3] sm:$0x1]
        %v387 = vadd.f32 %v385, %v386
        %388 = vst [vmem:[%s189] sm:$0x1] %v387
        %s389 = sand.u32 %s115, 1
        %s390 = scalar_lea.sflag [#allocation3], %s389
        %s391 = sand.u32 %s115, 1
        %s392 = scalar_lea.vmem [#allocation2], %s391
        // Predicated region
        $region37: #{tpu_custom_call.1} parent=35 // pred_check
          %p393 = pneg %p125
        $region38: #{tpu_custom_call.1} parent=35 // pred_check_branch
          %395 = sbr.rel (%p393) target = $region40
        $region39: #{tpu_custom_call.1} parent=35 // pred_region
          %397 = vsyncadd %s390, 0
          %s398 = scalar_lea.hbm %s4, %s18
          %s400 = sshll.u32 %s392, 4
          %s401 = int_to_ptr.vmem [resolvable:$true] %s400
          %s402 = sshll.u32 %s398, 4
          %s403 = int_to_ptr.hbm [resolvable:$true] %s402
          %405 = dma.vmem_to_hbm [thread:$0]  %s401, 16, %s403, %s390
        $region40: #{tpu_custom_call.1} parent=35 // pred_fallthru
          _
      $region36: #{tpu_custom_call.1} parent=5 // pred_fallthru
        _
      %p406 = scmp.le.s32.totalorder 2, %s13
      // Predicated region
      $region41: #{tpu_custom_call.1} parent=5 // pred_check
        %p407 = pneg %p406
      $region42: #{tpu_custom_call.1} parent=5 // pred_check_branch
        %409 = sbr.rel (%p407) target = $region44
      $region43: #{tpu_custom_call.1} parent=5 // pred_region
        %s410 = ssub.s32 %s13, 2
        // Predicated region
        $region45: #{tpu_custom_call.1} parent=43 // pred_check
          %p411 = pneg %p131
        $region46: #{tpu_custom_call.1} parent=43 // pred_check_branch
          %413 = sbr.rel (%p411) target = $region48
        $region47: #{tpu_custom_call.1} parent=43 // pred_region
          %s414 = sand.u32 %s116, 1
          %s415 = scalar_lea.sflag [#allocation3], %s414
          %s416 = sand.u32 %s116, 1
          %s417 = scalar_lea.vmem [#allocation2], %s416
          %419 = dma.done %s415, 16
        $region48: #{tpu_custom_call.1} parent=43 // pred_fallthru
          _
      $region44: #{tpu_custom_call.1} parent=5 // pred_fallthru
        _
    $region6: #{tpu_custom_call.1} parent=1 // loop_footer
      %s17 = sadd.s32 1, %s13
    $region7: #{tpu_custom_call.1} parent=1 // loop_footer_branch
      %12 = sbr.rel target = $region3
    $region8: #{tpu_custom_call.1} parent=1 // loop_exit
      _
    %420 = vsyncpa [#allocation3], 1
    %s421 = scalar_lea.sflag [#allocation3], 1
    %422 = vsyncpa %s421, 1

</llo_original>
